<compile_context>
chip_gen: v5e
topology: v5e:2x2
jax: 0.10.0
libtpu: 0.0.40
codegen_flags: <defaults>
</compile_context>

<pallas_src>
import functools

import jax
import jax.numpy as jnp
from jax import lax
from jax.experimental import pallas as pl
from jax.experimental.pallas import tpu as pltpu


# ---------------------------------------------------------------------------
# in-kernel helpers
# ---------------------------------------------------------------------------
def _layernorm(x, gamma, beta, eps=1e-5):
    # PyTorch nn.LayerNorm: biased variance, eps inside sqrt.
    mu = jnp.mean(x, axis=-1, keepdims=True)
    var = jnp.mean((x - mu) * (x - mu), axis=-1, keepdims=True)
    return (x - mu) * lax.rsqrt(var + eps) * gamma + beta


def _gelu_exact(x):
    # nn.GELU() default = exact erf formulation (keeps PyTorch parity).
    return 0.5 * x * (1.0 + lax.erf(x * 0.7071067811865476))


# ---------------------------------------------------------------------------
# Pallas kernel: one batch-block (batch_block elements) per grid step
# ---------------------------------------------------------------------------
def _nrn_kernel(x_ref,
                g1_ref, be1_ref,            # LayerNorm 1 (ntr)  (1, D)
                w1_ref, b1_ref,             # W1 (K_dim, N) bf16, b1 (K_dim, 1) f32
                w2_ref, b2_ref,             # W2 (N, K_dim) bf16, b2 (N, 1)    f32
                g2_ref, be2_ref,            # LayerNorm 2 (nar)  (1, D)
                w3t_ref, b3_ref,            # W3^T (D, F) bf16,   b3 (1, F)    f32
                w4t_ref, b4_ref,            # W4^T (F, D) bf16,   b4 (1, D)    f32
                o_ref,
                *, batch_block):
    # Invariant operands: loaded once per grid step.
    g1 = g1_ref[0]
    be1 = be1_ref[0]
    g2 = g2_ref[0]
    be2 = be2_ref[0]
    w1 = w1_ref[...]          # (K_dim, N)  bf16
    w2 = w2_ref[...]          # (N, K_dim)  bf16
    w3t = w3t_ref[...]        # (D, F)      bf16
    w4t = w4t_ref[...]        # (F, D)      bf16
    b1 = b1_ref[...]          # (K_dim, 1)  f32
    b2 = b2_ref[...]          # (N, 1)      f32
    b3 = b3_ref[...]          # (1, F)      f32
    b4 = b4_ref[...]          # (1, D)      f32

    # Static unroll over the (small) batch block; all matmuls keep D on lanes.
    for b in range(batch_block):
        xb = x_ref[b].astype(jnp.float32)                     # (N, D)

        # -------- ntr block: LN over D, FFN mixes over N (transpose-free) ----
        ln1 = _layernorm(xb, g1, be1).astype(jnp.bfloat16)    # (N, D)
        h = jnp.dot(w1, ln1, preferred_element_type=jnp.float32) + b1   # (K_dim, D)
        h = _gelu_exact(h).astype(jnp.bfloat16)
        xb = xb + jnp.dot(w2, h, preferred_element_type=jnp.float32) + b2  # (N, D)

        # -------- nar block: LN over D, FFN mixes over D ----------------------
        ln2 = _layernorm(xb, g2, be2).astype(jnp.bfloat16)    # (N, D)
        h2 = jnp.dot(ln2, w3t, preferred_element_type=jnp.float32) + b3  # (N, F)
        h2 = _gelu_exact(h2).astype(jnp.bfloat16)
        xb = xb + jnp.dot(h2, w4t, preferred_element_type=jnp.float32) + b4  # (N, D)

        o_ref[b] = xb.astype(o_ref.dtype)


# ---------------------------------------------------------------------------
# wrapper
# ---------------------------------------------------------------------------
def nrn_block_forward(x, params):
    B, N, D = x.shape
    (g1, be1, w1, b1, w2, b2, g2, be2, w3, b3, w4, b4) = params
    K_dim = w1.shape[0]
    feat_dim = w3.shape[0]

    # One-time wrapper-side prep (single XLA ops, not repeated per grid step):
    # bf16 weights for the MXU, nar weights pre-transposed, biases/LN params
    # pre-shaped for direct sublane/lane broadcast inside the kernel.
    w1b = w1.astype(jnp.bfloat16)                  # (K_dim, N)
    w2b = w2.astype(jnp.bfloat16)                  # (N, K_dim)
    w3t = w3.T.astype(jnp.bfloat16)                # (D, feat_dim)
    w4t = w4.T.astype(jnp.bfloat16)                # (feat_dim, D)
    b1c = b1.reshape(K_dim, 1).astype(jnp.float32)
    b2c = b2.reshape(N, 1).astype(jnp.float32)
    b3r = b3.reshape(1, feat_dim).astype(jnp.float32)
    b4r = b4.reshape(1, D).astype(jnp.float32)
    g1r = g1.reshape(1, D).astype(jnp.float32)
    be1r = be1.reshape(1, D).astype(jnp.float32)
    g2r = g2.reshape(1, D).astype(jnp.float32)
    be2r = be2.reshape(1, D).astype(jnp.float32)

    # Grid: at most 2 batch-blocks.  Near-collapsed serial loop on single-TC
    # v5e/v6e (minimal per-step overhead), 2-way parallel axis for v7x's two
    # TensorCores.
    if B % 2 == 0 and B > 1:
        batch_block = B // 2
        grid = 2
    else:
        batch_block = B
        grid = 1

    def full_spec(arr):
        nd = arr.ndim
        return pl.BlockSpec(arr.shape, lambda i, _nd=nd: (0,) * _nd)

    kernel = functools.partial(_nrn_kernel, batch_block=batch_block)

    out = pl.pallas_call(
        kernel,
        out_shape=jax.ShapeDtypeStruct((B, N, D), x.dtype),
        grid_spec=pltpu.PrefetchScalarGridSpec(
            num_scalar_prefetch=0,
            grid=(grid,),
            in_specs=[
                pl.BlockSpec((batch_block, N, D), lambda i: (i, 0, 0)),  # x
                full_spec(g1r), full_spec(be1r),                         # LN1
                full_spec(w1b), full_spec(b1c),                          # W1, b1
                full_spec(w2b), full_spec(b2c),                          # W2, b2
                full_spec(g2r), full_spec(be2r),                         # LN2
                full_spec(w3t), full_spec(b3r),                          # W3^T, b3
                full_spec(w4t), full_spec(b4r),                          # W4^T, b4
            ],
            out_specs=pl.BlockSpec((batch_block, N, D), lambda i: (i, 0, 0)),
        ),
        compiler_params=pltpu.CompilerParams(
            dimension_semantics=("parallel",),
            vmem_limit_bytes=32 * 1024 * 1024),
    )(x,
      g1r, be1r,
      w1b, b1c,
      w2b, b2c,
      g2r, be2r,
      w3t, b3r,
      w4t, b4r)
    return out


# ---------------------------------------------------------------------------
# pure-JAX reference (f32, matches the PyTorch module semantics)
# ---------------------------------------------------------------------------
def nrn_block_ref(x, params):
    (g1, be1, w1, b1, w2, b2, g2, be2, w3, b3, w4, b4) = params

    def ln(v, g, b, eps=1e-5):
        mu = jnp.mean(v, axis=-1, keepdims=True)
        var = jnp.mean((v - mu) ** 2, axis=-1, keepdims=True)
        return (v - mu) / jnp.sqrt(var + eps) * g + b

    gelu = lambda v: 0.5 * v * (1.0 + lax.erf(v / jnp.sqrt(2.0)))

    # ntr
    y = ln(x, g1, be1)
    yt = jnp.swapaxes(y, 1, 2)                       # (B, D, N)
    h = gelu(yt @ w1.T + b1)
    out_t = h @ w2.T + b2
    x = x + jnp.swapaxes(out_t, 1, 2)
    # nar
    y2 = ln(x, g2, be2)
    h2 = gelu(y2 @ w3.T + b3)
    x = x + (h2 @ w4.T + b4)
    return x


# ---------------------------------------------------------------------------
# main
# ---------------------------------------------------------------------------
if __name__ == "__main__":
    # small shapes consistent with the module: x [B, K_neighbor, features]
    B, K_neighbor, features = 2, 8, 32
    K_dim, feature_dim = 16, 64

    key = jax.random.PRNGKey(0)
    ks = jax.random.split(key, 16)

    x = jax.random.normal(ks[0], (B, K_neighbor, features), jnp.float32)

    def init(k, shape, scale=0.1):
        return scale * jax.random.normal(k, shape, jnp.float32)

    params = (
        init(ks[1], (features,)) + 1.0,          # LN1 gamma
        init(ks[2], (features,)),                # LN1 beta
        init(ks[3], (K_dim, K_neighbor)),        # W1  (K_neighbor -> K_dim)
        init(ks[4], (K_dim,)),                   # b1
        init(ks[5], (K_neighbor, K_dim)),        # W2  (K_dim -> K_neighbor)
        init(ks[6], (K_neighbor,)),              # b2
        init(ks[7], (features,)) + 1.0,          # LN2 gamma
        init(ks[8], (features,)),                # LN2 beta
        init(ks[9], (feature_dim, features)),    # W3  (features -> feature_dim)
        init(ks[10], (feature_dim,)),            # b3
        init(ks[11], (features, feature_dim)),   # W4  (feature_dim -> features)
        init(ks[12], (features,)),               # b4
    )

    out = nrn_block_forward(x, params)
    out = jax.block_until_ready(out)

    ref = nrn_block_ref(x, params)
    assert out.shape == (B, K_neighbor, features)
    # Tolerance accounts for bf16 MXU operands (f32 accumulation).
    max_diff = jnp.max(jnp.abs(out - ref))
    assert jnp.allclose(out, ref, rtol=3e-2, atol=3e-2), (
        f"max abs diff {max_diff}")

    print("KERNEL_OK")
</pallas_src>

<mosaic_0001>
module attributes {stable_mosaic.version = 11 : i64} {
  func.func @_nrn_kernel(%arg0: i32, %arg1: memref<1x8x32xf32, #tpu.memory_space<vmem>>, %arg2: memref<1x32xf32, #tpu.memory_space<vmem>>, %arg3: memref<1x32xf32, #tpu.memory_space<vmem>>, %arg4: memref<16x8xbf16, #tpu.memory_space<vmem>>, %arg5: memref<16x1xf32, #tpu.memory_space<vmem>>, %arg6: memref<8x16xbf16, #tpu.memory_space<vmem>>, %arg7: memref<8x1xf32, #tpu.memory_space<vmem>>, %arg8: memref<1x32xf32, #tpu.memory_space<vmem>>, %arg9: memref<1x32xf32, #tpu.memory_space<vmem>>, %arg10: memref<32x64xbf16, #tpu.memory_space<vmem>>, %arg11: memref<1x64xf32, #tpu.memory_space<vmem>>, %arg12: memref<64x32xbf16, #tpu.memory_space<vmem>>, %arg13: memref<1x32xf32, #tpu.memory_space<vmem>>, %arg14: memref<1x8x32xf32, #tpu.memory_space<vmem>>) attributes {dimension_semantics = [#tpu.dimension_semantics<parallel>], iteration_bounds = array<i64: 2>, scalar_prefetch = 0 : i64, scratch_operands = 0 : i64, tpu.core_type = #tpu.core_type<tc>, window_params = [{transform_indices = @transform_0, window_bounds = array<i64: 1, 8, 32>}, {pipeline_mode = #tpu.pipeline_mode<synchronous>, transform_indices = @transform_1, window_bounds = array<i64: 1, 32>}, {pipeline_mode = #tpu.pipeline_mode<synchronous>, transform_indices = @transform_2, window_bounds = array<i64: 1, 32>}, {pipeline_mode = #tpu.pipeline_mode<synchronous>, transform_indices = @transform_3, window_bounds = array<i64: 16, 8>}, {pipeline_mode = #tpu.pipeline_mode<synchronous>, transform_indices = @transform_4, window_bounds = array<i64: 16, 1>}, {pipeline_mode = #tpu.pipeline_mode<synchronous>, transform_indices = @transform_5, window_bounds = array<i64: 8, 16>}, {pipeline_mode = #tpu.pipeline_mode<synchronous>, transform_indices = @transform_6, window_bounds = array<i64: 8, 1>}, {pipeline_mode = #tpu.pipeline_mode<synchronous>, transform_indices = @transform_7, window_bounds = array<i64: 1, 32>}, {pipeline_mode = #tpu.pipeline_mode<synchronous>, transform_indices = @transform_8, window_bounds = array<i64: 1, 32>}, {pipeline_mode = #tpu.pipeline_mode<synchronous>, transform_indices = @transform_9, window_bounds = array<i64: 32, 64>}, {pipeline_mode = #tpu.pipeline_mode<synchronous>, transform_indices = @transform_10, window_bounds = array<i64: 1, 64>}, {pipeline_mode = #tpu.pipeline_mode<synchronous>, transform_indices = @transform_11, window_bounds = array<i64: 64, 32>}, {pipeline_mode = #tpu.pipeline_mode<synchronous>, transform_indices = @transform_12, window_bounds = array<i64: 1, 32>}, {transform_indices = @transform_13, window_bounds = array<i64: 1, 8, 32>}]} {
    %c0 = arith.constant 0 : index
    %c0_0 = arith.constant 0 : index
    %0 = vector.load %arg2[%c0, %c0_0] : memref<1x32xf32, #tpu.memory_space<vmem>>, vector<1x32xf32>
    %1 = vector.shape_cast %0 : vector<1x32xf32> to vector<32xf32>
    %c0_1 = arith.constant 0 : index
    %c0_2 = arith.constant 0 : index
    %2 = vector.load %arg3[%c0_1, %c0_2] : memref<1x32xf32, #tpu.memory_space<vmem>>, vector<1x32xf32>
    %3 = vector.shape_cast %2 : vector<1x32xf32> to vector<32xf32>
    %c0_3 = arith.constant 0 : index
    %c0_4 = arith.constant 0 : index
    %4 = vector.load %arg8[%c0_3, %c0_4] : memref<1x32xf32, #tpu.memory_space<vmem>>, vector<1x32xf32>
    %5 = vector.shape_cast %4 : vector<1x32xf32> to vector<32xf32>
    %c0_5 = arith.constant 0 : index
    %c0_6 = arith.constant 0 : index
    %6 = vector.load %arg9[%c0_5, %c0_6] : memref<1x32xf32, #tpu.memory_space<vmem>>, vector<1x32xf32>
    %7 = vector.shape_cast %6 : vector<1x32xf32> to vector<32xf32>
    %c0_7 = arith.constant 0 : index
    %c0_8 = arith.constant 0 : index
    %8 = vector.load %arg4[%c0_7, %c0_8] : memref<16x8xbf16, #tpu.memory_space<vmem>>, vector<16x8xbf16>
    %c0_9 = arith.constant 0 : index
    %c0_10 = arith.constant 0 : index
    %9 = vector.load %arg6[%c0_9, %c0_10] : memref<8x16xbf16, #tpu.memory_space<vmem>>, vector<8x16xbf16>
    %c0_11 = arith.constant 0 : index
    %c0_12 = arith.constant 0 : index
    %10 = vector.load %arg10[%c0_11, %c0_12] : memref<32x64xbf16, #tpu.memory_space<vmem>>, vector<32x64xbf16>
    %c0_13 = arith.constant 0 : index
    %c0_14 = arith.constant 0 : index
    %11 = vector.load %arg12[%c0_13, %c0_14] : memref<64x32xbf16, #tpu.memory_space<vmem>>, vector<64x32xbf16>
    %c0_15 = arith.constant 0 : index
    %c0_16 = arith.constant 0 : index
    %12 = vector.load %arg5[%c0_15, %c0_16] : memref<16x1xf32, #tpu.memory_space<vmem>>, vector<16x1xf32>
    %c0_17 = arith.constant 0 : index
    %c0_18 = arith.constant 0 : index
    %13 = vector.load %arg7[%c0_17, %c0_18] : memref<8x1xf32, #tpu.memory_space<vmem>>, vector<8x1xf32>
    %c0_19 = arith.constant 0 : index
    %c0_20 = arith.constant 0 : index
    %14 = vector.load %arg11[%c0_19, %c0_20] : memref<1x64xf32, #tpu.memory_space<vmem>>, vector<1x64xf32>
    %c0_21 = arith.constant 0 : index
    %c0_22 = arith.constant 0 : index
    %15 = vector.load %arg13[%c0_21, %c0_22] : memref<1x32xf32, #tpu.memory_space<vmem>>, vector<1x32xf32>
    %c0_23 = arith.constant 0 : index
    %c0_24 = arith.constant 0 : index
    %c0_25 = arith.constant 0 : index
    %16 = vector.load %arg1[%c0_23, %c0_24, %c0_25] : memref<1x8x32xf32, #tpu.memory_space<vmem>>, vector<1x8x32xf32>
    %17 = vector.shape_cast %16 : vector<1x8x32xf32> to vector<8x32xf32>
    %cst = arith.constant dense<0.000000e+00> : vector<8xf32>
    %18 = vector.multi_reduction <add>, %17, %cst [1] : vector<8x32xf32> to vector<8xf32>
    %19 = vector.shape_cast %18 : vector<8xf32> to vector<8x1xf32>
    %cst_26 = arith.constant 3.200000e+01 : f32
    %20 = vector.broadcast %cst_26 : f32 to vector<8x1xf32>
    %21 = arith.divf %19, %20 : vector<8x1xf32>
    %22 = vector.broadcast %21 : vector<8x1xf32> to vector<8x32xf32>
    %23 = arith.subf %17, %22 : vector<8x32xf32>
    %24 = vector.broadcast %21 : vector<8x1xf32> to vector<8x32xf32>
    %25 = arith.subf %17, %24 : vector<8x32xf32>
    %26 = arith.mulf %23, %25 : vector<8x32xf32>
    %cst_27 = arith.constant dense<0.000000e+00> : vector<8xf32>
    %27 = vector.multi_reduction <add>, %26, %cst_27 [1] : vector<8x32xf32> to vector<8xf32>
    %28 = vector.shape_cast %27 : vector<8xf32> to vector<8x1xf32>
    %cst_28 = arith.constant 3.200000e+01 : f32
    %29 = vector.broadcast %cst_28 : f32 to vector<8x1xf32>
    %30 = arith.divf %28, %29 : vector<8x1xf32>
    %31 = vector.broadcast %21 : vector<8x1xf32> to vector<8x32xf32>
    %32 = arith.subf %17, %31 : vector<8x32xf32>
    %cst_29 = arith.constant 9.99999974E-6 : f32
    %33 = vector.broadcast %cst_29 : f32 to vector<8x1xf32>
    %34 = arith.addf %30, %33 : vector<8x1xf32>
    %35 = math.rsqrt %34 : vector<8x1xf32>
    %36 = vector.broadcast %35 : vector<8x1xf32> to vector<8x32xf32>
    %37 = arith.mulf %32, %36 : vector<8x32xf32>
    %38 = vector.shape_cast %1 : vector<32xf32> to vector<1x32xf32>
    %39 = vector.broadcast %38 : vector<1x32xf32> to vector<8x32xf32>
    %40 = arith.mulf %37, %39 : vector<8x32xf32>
    %41 = vector.shape_cast %3 : vector<32xf32> to vector<1x32xf32>
    %42 = vector.broadcast %41 : vector<1x32xf32> to vector<8x32xf32>
    %43 = arith.addf %40, %42 : vector<8x32xf32>
    %44 = arith.truncf %43 : vector<8x32xf32> to vector<8x32xbf16>
    %cst_30 = arith.constant dense<0.000000e+00> : vector<16x32xf32>
    %45 = tpu.matmul %8, %44, %cst_30 {dimension_numbers = #tpu.dot_dimension_numbers<[1], [0], [0], [1], [0, 0, 1, 1], [], []>} : vector<16x8xbf16>, vector<8x32xbf16>, vector<16x32xf32> -> vector<16x32xf32>
    %46 = vector.broadcast %12 : vector<16x1xf32> to vector<16x32xf32>
    %47 = arith.addf %45, %46 : vector<16x32xf32>
    %cst_31 = arith.constant 5.000000e-01 : f32
    %48 = vector.broadcast %cst_31 : f32 to vector<16x32xf32>
    %49 = arith.mulf %48, %47 : vector<16x32xf32>
    %cst_32 = arith.constant 0.707106769 : f32
    %50 = vector.broadcast %cst_32 : f32 to vector<16x32xf32>
    %51 = arith.mulf %47, %50 : vector<16x32xf32>
    %52 = math.erf %51 : vector<16x32xf32>
    %cst_33 = arith.constant 1.000000e+00 : f32
    %53 = vector.broadcast %cst_33 : f32 to vector<16x32xf32>
    %54 = arith.addf %53, %52 : vector<16x32xf32>
    %55 = arith.mulf %49, %54 : vector<16x32xf32>
    %56 = arith.truncf %55 : vector<16x32xf32> to vector<16x32xbf16>
    %cst_34 = arith.constant dense<0.000000e+00> : vector<8x32xf32>
    %57 = tpu.matmul %9, %56, %cst_34 {dimension_numbers = #tpu.dot_dimension_numbers<[1], [0], [0], [1], [0, 0, 1, 1], [], []>} : vector<8x16xbf16>, vector<16x32xbf16>, vector<8x32xf32> -> vector<8x32xf32>
    %58 = arith.addf %17, %57 : vector<8x32xf32>
    %59 = vector.broadcast %13 : vector<8x1xf32> to vector<8x32xf32>
    %60 = arith.addf %58, %59 : vector<8x32xf32>
    %cst_35 = arith.constant dense<0.000000e+00> : vector<8xf32>
    %61 = vector.multi_reduction <add>, %60, %cst_35 [1] : vector<8x32xf32> to vector<8xf32>
    %62 = vector.shape_cast %61 : vector<8xf32> to vector<8x1xf32>
    %cst_36 = arith.constant 3.200000e+01 : f32
    %63 = vector.broadcast %cst_36 : f32 to vector<8x1xf32>
    %64 = arith.divf %62, %63 : vector<8x1xf32>
    %65 = vector.broadcast %64 : vector<8x1xf32> to vector<8x32xf32>
    %66 = arith.subf %60, %65 : vector<8x32xf32>
    %67 = vector.broadcast %64 : vector<8x1xf32> to vector<8x32xf32>
    %68 = arith.subf %60, %67 : vector<8x32xf32>
    %69 = arith.mulf %66, %68 : vector<8x32xf32>
    %cst_37 = arith.constant dense<0.000000e+00> : vector<8xf32>
    %70 = vector.multi_reduction <add>, %69, %cst_37 [1] : vector<8x32xf32> to vector<8xf32>
    %71 = vector.shape_cast %70 : vector<8xf32> to vector<8x1xf32>
    %cst_38 = arith.constant 3.200000e+01 : f32
    %72 = vector.broadcast %cst_38 : f32 to vector<8x1xf32>
    %73 = arith.divf %71, %72 : vector<8x1xf32>
    %74 = vector.broadcast %64 : vector<8x1xf32> to vector<8x32xf32>
    %75 = arith.subf %60, %74 : vector<8x32xf32>
    %cst_39 = arith.constant 9.99999974E-6 : f32
    %76 = vector.broadcast %cst_39 : f32 to vector<8x1xf32>
    %77 = arith.addf %73, %76 : vector<8x1xf32>
    %78 = math.rsqrt %77 : vector<8x1xf32>
    %79 = vector.broadcast %78 : vector<8x1xf32> to vector<8x32xf32>
    %80 = arith.mulf %75, %79 : vector<8x32xf32>
    %81 = vector.shape_cast %5 : vector<32xf32> to vector<1x32xf32>
    %82 = vector.broadcast %81 : vector<1x32xf32> to vector<8x32xf32>
    %83 = arith.mulf %80, %82 : vector<8x32xf32>
    %84 = vector.shape_cast %7 : vector<32xf32> to vector<1x32xf32>
    %85 = vector.broadcast %84 : vector<1x32xf32> to vector<8x32xf32>
    %86 = arith.addf %83, %85 : vector<8x32xf32>
    %87 = arith.truncf %86 : vector<8x32xf32> to vector<8x32xbf16>
    %cst_40 = arith.constant dense<0.000000e+00> : vector<8x64xf32>
    %88 = tpu.matmul %87, %10, %cst_40 {dimension_numbers = #tpu.dot_dimension_numbers<[1], [0], [0], [1], [0, 0, 1, 1], [], []>} : vector<8x32xbf16>, vector<32x64xbf16>, vector<8x64xf32> -> vector<8x64xf32>
    %89 = vector.broadcast %14 : vector<1x64xf32> to vector<8x64xf32>
    %90 = arith.addf %88, %89 : vector<8x64xf32>
    %cst_41 = arith.constant 5.000000e-01 : f32
    %91 = vector.broadcast %cst_41 : f32 to vector<8x64xf32>
    %92 = arith.mulf %91, %90 : vector<8x64xf32>
    %cst_42 = arith.constant 0.707106769 : f32
    %93 = vector.broadcast %cst_42 : f32 to vector<8x64xf32>
    %94 = arith.mulf %90, %93 : vector<8x64xf32>
    %95 = math.erf %94 : vector<8x64xf32>
    %cst_43 = arith.constant 1.000000e+00 : f32
    %96 = vector.broadcast %cst_43 : f32 to vector<8x64xf32>
    %97 = arith.addf %96, %95 : vector<8x64xf32>
    %98 = arith.mulf %92, %97 : vector<8x64xf32>
    %99 = arith.truncf %98 : vector<8x64xf32> to vector<8x64xbf16>
    %cst_44 = arith.constant dense<0.000000e+00> : vector<8x32xf32>
    %100 = tpu.matmul %99, %11, %cst_44 {dimension_numbers = #tpu.dot_dimension_numbers<[1], [0], [0], [1], [0, 0, 1, 1], [], []>} : vector<8x64xbf16>, vector<64x32xbf16>, vector<8x32xf32> -> vector<8x32xf32>
    %101 = arith.addf %60, %100 : vector<8x32xf32>
    %102 = vector.broadcast %15 : vector<1x32xf32> to vector<8x32xf32>
    %103 = arith.addf %101, %102 : vector<8x32xf32>
    %c0_45 = arith.constant 0 : index
    %c0_46 = arith.constant 0 : index
    %c0_47 = arith.constant 0 : index
    %104 = vector.load %arg14[%c0_45, %c0_46, %c0_47] : memref<1x8x32xf32, #tpu.memory_space<vmem>>, vector<1x8x32xf32>
    %105 = vector.shape_cast %104 : vector<1x8x32xf32> to vector<8x32xf32>
    %106 = vector.shape_cast %103 : vector<8x32xf32> to vector<1x8x32xf32>
    tpu.vector_store %arg14[%c0_45, %c0_46, %c0_47], %106 {strides = array<i32>} : memref<1x8x32xf32, #tpu.memory_space<vmem>>, vector<1x8x32xf32>,
    return
  }
  func.func @transform_0(%arg0: i32) -> (i32, i32, i32) {
    %c0_i32 = arith.constant 0 : i32
    %c0_i32_0 = arith.constant 0 : i32
    %c0_i32_1 = arith.constant 0 : i32
    return %arg0, %c0_i32, %c0_i32_0 : i32, i32, i32
  }
  func.func @transform_1(%arg0: i32) -> (i32, i32) {
    %c0_i32 = arith.constant 0 : i32
    %c0_i32_0 = arith.constant 0 : i32
    %c0_i32_1 = arith.constant 0 : i32
    return %c0_i32, %c0_i32_0 : i32, i32
  }
  func.func @transform_2(%arg0: i32) -> (i32, i32) {
    %c0_i32 = arith.constant 0 : i32
    %c0_i32_0 = arith.constant 0 : i32
    %c0_i32_1 = arith.constant 0 : i32
    return %c0_i32, %c0_i32_0 : i32, i32
  }
  func.func @transform_3(%arg0: i32) -> (i32, i32) {
    %c0_i32 = arith.constant 0 : i32
    %c0_i32_0 = arith.constant 0 : i32
    %c0_i32_1 = arith.constant 0 : i32
    return %c0_i32, %c0_i32_0 : i32, i32
  }
  func.func @transform_4(%arg0: i32) -> (i32, i32) {
    %c0_i32 = arith.constant 0 : i32
    %c0_i32_0 = arith.constant 0 : i32
    %c0_i32_1 = arith.constant 0 : i32
    return %c0_i32, %c0_i32_0 : i32, i32
  }
  func.func @transform_5(%arg0: i32) -> (i32, i32) {
    %c0_i32 = arith.constant 0 : i32
    %c0_i32_0 = arith.constant 0 : i32
    %c0_i32_1 = arith.constant 0 : i32
    return %c0_i32, %c0_i32_0 : i32, i32
  }
  func.func @transform_6(%arg0: i32) -> (i32, i32) {
    %c0_i32 = arith.constant 0 : i32
    %c0_i32_0 = arith.constant 0 : i32
    %c0_i32_1 = arith.constant 0 : i32
    return %c0_i32, %c0_i32_0 : i32, i32
  }
  func.func @transform_7(%arg0: i32) -> (i32, i32) {
    %c0_i32 = arith.constant 0 : i32
    %c0_i32_0 = arith.constant 0 : i32
    %c0_i32_1 = arith.constant 0 : i32
    return %c0_i32, %c0_i32_0 : i32, i32
  }
  func.func @transform_8(%arg0: i32) -> (i32, i32) {
    %c0_i32 = arith.constant 0 : i32
    %c0_i32_0 = arith.constant 0 : i32
    %c0_i32_1 = arith.constant 0 : i32
    return %c0_i32, %c0_i32_0 : i32, i32
  }
  func.func @transform_9(%arg0: i32) -> (i32, i32) {
    %c0_i32 = arith.constant 0 : i32
    %c0_i32_0 = arith.constant 0 : i32
    %c0_i32_1 = arith.constant 0 : i32
    return %c0_i32, %c0_i32_0 : i32, i32
  }
  func.func @transform_10(%arg0: i32) -> (i32, i32) {
    %c0_i32 = arith.constant 0 : i32
    %c0_i32_0 = arith.constant 0 : i32
    %c0_i32_1 = arith.constant 0 : i32
    return %c0_i32, %c0_i32_0 : i32, i32
  }
  func.func @transform_11(%arg0: i32) -> (i32, i32) {
    %c0_i32 = arith.constant 0 : i32
    %c0_i32_0 = arith.constant 0 : i32
    %c0_i32_1 = arith.constant 0 : i32
    return %c0_i32, %c0_i32_0 : i32, i32
  }
  func.func @transform_12(%arg0: i32) -> (i32, i32) {
    %c0_i32 = arith.constant 0 : i32
    %c0_i32_0 = arith.constant 0 : i32
    %c0_i32_1 = arith.constant 0 : i32
    return %c0_i32, %c0_i32_0 : i32, i32
  }
  func.func @transform_13(%arg0: i32) -> (i32, i32, i32) {
    %c0_i32 = arith.constant 0 : i32
    %c0_i32_0 = arith.constant 0 : i32
    %c0_i32_1 = arith.constant 0 : i32
    return %arg0, %c0_i32, %c0_i32_0 : i32, i32, i32
  }
}

</mosaic_0001>

<llo_original>
// kernel: tpu_custom_call.1
$region0: #{tpu_custom_call.1}
  #allocation0 [shape = 'u32[]', space=smem, size = 0x4, offset = 0x4, fixed_abs, tag = 'smem constant byte address 0x4 - core index']
  #allocation1 [shape = 'u32[72,128]{1,0:T(1,128)}', space=vmem, size = 0x9000, scoped, tag = 'internal scratch']
  %s0 = inlined_call_operand.vmem [shape: f32[2,8,32], index: 0, kind: input, shape index: {}]
  %s1 = inlined_call_operand.vmem [shape: f32[1,32], index: 1, kind: input, shape index: {}]
  %s2 = inlined_call_operand.vmem [shape: f32[1,32], index: 2, kind: input, shape index: {}]
  %s3 = inlined_call_operand.vmem [shape: bf16[16,8], index: 3, kind: input, shape index: {}]
  %s4 = inlined_call_operand.vmem [shape: f32[16,1], index: 4, kind: input, shape index: {}]
  %s5 = inlined_call_operand.vmem [shape: bf16[8,16], index: 5, kind: input, shape index: {}]
  %s6 = inlined_call_operand.vmem [shape: f32[8,1], index: 6, kind: input, shape index: {}]
  %s7 = inlined_call_operand.vmem [shape: f32[1,32], index: 7, kind: input, shape index: {}]
  %s8 = inlined_call_operand.vmem [shape: f32[1,32], index: 8, kind: input, shape index: {}]
  %s9 = inlined_call_operand.vmem [shape: bf16[32,64], index: 9, kind: input, shape index: {}]
  %s10 = inlined_call_operand.vmem [shape: f32[1,64], index: 10, kind: input, shape index: {}]
  %s11 = inlined_call_operand.vmem [shape: bf16[64,32], index: 11, kind: input, shape index: {}]
  %s12 = inlined_call_operand.vmem [shape: f32[1,32], index: 12, kind: input, shape index: {}]
  %s13 = inlined_call_operand.hbm [shape: f32[2,8,32], index: 13, kind: output, shape index: {}]
  %s14 = sld [smem:[#allocation0]]
  $region85: #{tpu_custom_call.1} parent=0
    _
  %s16 = ssub.s32 1, %s14
  %s17 = scalar_select 0, %s16, %s14
  $region1: #{tpu_custom_call.1} parent=0
    #allocation2 [shape = 'u8[8192]{0}', space=vmem, size = 0x2000, scoped, tag = 'output window, operand 0']
    #allocation3 [shape = 's32[2]{0}', space=sflag, size = 0x8, scoped, tag = 'scoped memory for tpu_custom_call.1']
    %18 = vsyncpa [#allocation3], 0
    %s19 = scalar_lea.sflag [#allocation3], 1
    %20 = vsyncpa %s19, 0
    loop: start=0, step=1, limit=4
    $region2: #{tpu_custom_call.1} parent=1 // loop_pre_header
      _
    $region3: #{tpu_custom_call.1} parent=1 // loop_header
      %s22 = sphi 0, %s26
      %p23 = scmp.ge.s32.totalorder %s22, 4
      %s32 = sphi 0, %s34
      %s35 = sphi 0, %s32
      %s36 = sphi 0, %s35
      %s52 = sphi 0, %s36
      %s56 = sphi 0, %s56
      %s58 = sphi 0, %s56
      %s59 = sphi 0, %s58
      %s73 = sphi 0, %s59
      %s77 = sphi 0, %s77
      %s79 = sphi 0, %s77
      %s80 = sphi 0, %s79
      %s94 = sphi 0, %s80
      %s98 = sphi 0, %s98
      %s100 = sphi 0, %s98
      %s101 = sphi 0, %s100
      %s115 = sphi 0, %s101
      %s119 = sphi 0, %s119
      %s121 = sphi 0, %s119
      %s122 = sphi 0, %s121
      %s136 = sphi 0, %s122
      %s140 = sphi 0, %s140
      %s142 = sphi 0, %s140
      %s143 = sphi 0, %s142
      %s157 = sphi 0, %s143
      %s161 = sphi 0, %s161
      %s163 = sphi 0, %s161
      %s164 = sphi 0, %s163
      %s178 = sphi 0, %s164
      %s182 = sphi 0, %s182
      %s184 = sphi 0, %s182
      %s185 = sphi 0, %s184
      %s199 = sphi 0, %s185
      %s203 = sphi 0, %s203
      %s205 = sphi 0, %s203
      %s206 = sphi 0, %s205
      %s220 = sphi 0, %s206
      %s224 = sphi 0, %s224
      %s226 = sphi 0, %s224
      %s227 = sphi 0, %s226
      %s241 = sphi 0, %s227
      %s245 = sphi 0, %s245
      %s247 = sphi 0, %s245
      %s248 = sphi 0, %s247
      %s262 = sphi 0, %s248
      %s266 = sphi 0, %s266
      %s268 = sphi 0, %s266
      %s269 = sphi 0, %s268
      %s283 = sphi 0, %s269
      %s287 = sphi 0, %s287
      %s289 = sphi 0, %s287
      %s290 = sphi 0, %s289
      %s304 = sphi 0, %s290
      %s310 = sphi 0, %s312
      %s313 = sphi 0, %s310
      %s314 = sphi 0, %s313
      %s330 = sphi 0, %s314
    $region4: #{tpu_custom_call.1} parent=1 // loop_header_branch
      %25 = sbr.rel (%p23) target = $region8
    $region5: #{tpu_custom_call.1} parent=1 // loop_body
      %s27 = ssub.s32 %s22, 1
      %s28 = ssub.s32 %s22, 2
      %s29 = sadd.s32 %s22, 1
      %s30 = ssub.s32 %s22, %s29
      %p31 = scmp.eq.s32.totalorder %s30, 0
      %s33 = sadd.s32 %s32, 1
      %s34 = scalar_select %p31, %s32, %s33
      %p37 = pneg %p31
      %p38 = scmp.eq.s32.totalorder %s22, 1
      %p39 = por %p37, %p38
      %p40 = scmp.ne.s32.totalorder %s32, %s35
      %p41 = scmp.eq.s32.totalorder %s22, 0
      %p42 = por %p40, %p41
      %p43 = scmp.ne.s32.totalorder %s32, %s35
      %p44 = scmp.eq.s32.totalorder %s27, 1
      %p45 = por %p43, %p44
      %p46 = scmp.ne.s32.totalorder %s35, %s36
      %p47 = scmp.eq.s32.totalorder %s27, 0
      %p48 = por %p46, %p47
      %p49 = scmp.ne.s32.totalorder %s35, %s36
      %p50 = scmp.eq.s32.totalorder %s28, 1
      %p51 = por %p49, %p50
      %p53 = scmp.ne.s32.totalorder %s36, %s52
      %p54 = scmp.eq.s32.totalorder %s28, 0
      %p55 = por %p53, %p54
      %s57 = sadd.s32 %s56, 1
      %p60 = scmp.eq.s32.totalorder %s22, 1
      %p61 = scmp.ne.s32.totalorder %s56, %s58
      %p62 = scmp.eq.s32.totalorder %s22, 0
      %p63 = por %p61, %p62
      %p64 = scmp.ne.s32.totalorder %s56, %s58
      %p65 = scmp.eq.s32.totalorder %s27, 1
      %p66 = por %p64, %p65
      %p67 = scmp.ne.s32.totalorder %s58, %s59
      %p68 = scmp.eq.s32.totalorder %s27, 0
      %p69 = por %p67, %p68
      %p70 = scmp.ne.s32.totalorder %s58, %s59
      %p71 = scmp.eq.s32.totalorder %s28, 1
      %p72 = por %p70, %p71
      %p74 = scmp.ne.s32.totalorder %s59, %s73
      %p75 = scmp.eq.s32.totalorder %s28, 0
      %p76 = por %p74, %p75
      %s78 = sadd.s32 %s77, 1
      %p81 = scmp.eq.s32.totalorder %s22, 1
      %p82 = scmp.ne.s32.totalorder %s77, %s79
      %p83 = scmp.eq.s32.totalorder %s22, 0
      %p84 = por %p82, %p83
      %p85 = scmp.ne.s32.totalorder %s77, %s79
      %p86 = scmp.eq.s32.totalorder %s27, 1
      %p87 = por %p85, %p86
      %p88 = scmp.ne.s32.totalorder %s79, %s80
      %p89 = scmp.eq.s32.totalorder %s27, 0
      %p90 = por %p88, %p89
      %p91 = scmp.ne.s32.totalorder %s79, %s80
      %p92 = scmp.eq.s32.totalorder %s28, 1
      %p93 = por %p91, %p92
      %p95 = scmp.ne.s32.totalorder %s80, %s94
      %p96 = scmp.eq.s32.totalorder %s28, 0
      %p97 = por %p95, %p96
      %s99 = sadd.s32 %s98, 1
      %p102 = scmp.eq.s32.totalorder %s22, 1
      %p103 = scmp.ne.s32.totalorder %s98, %s100
      %p104 = scmp.eq.s32.totalorder %s22, 0
      %p105 = por %p103, %p104
      %p106 = scmp.ne.s32.totalorder %s98, %s100
      %p107 = scmp.eq.s32.totalorder %s27, 1
      %p108 = por %p106, %p107
      %p109 = scmp.ne.s32.totalorder %s100, %s101
      %p110 = scmp.eq.s32.totalorder %s27, 0
      %p111 = por %p109, %p110
      %p112 = scmp.ne.s32.totalorder %s100, %s101
      %p113 = scmp.eq.s32.totalorder %s28, 1
      %p114 = por %p112, %p113
      %p116 = scmp.ne.s32.totalorder %s101, %s115
      %p117 = scmp.eq.s32.totalorder %s28, 0
      %p118 = por %p116, %p117
      %s120 = sadd.s32 %s119, 1
      %p123 = scmp.eq.s32.totalorder %s22, 1
      %p124 = scmp.ne.s32.totalorder %s119, %s121
      %p125 = scmp.eq.s32.totalorder %s22, 0
      %p126 = por %p124, %p125
      %p127 = scmp.ne.s32.totalorder %s119, %s121
      %p128 = scmp.eq.s32.totalorder %s27, 1
      %p129 = por %p127, %p128
      %p130 = scmp.ne.s32.totalorder %s121, %s122
      %p131 = scmp.eq.s32.totalorder %s27, 0
      %p132 = por %p130, %p131
      %p133 = scmp.ne.s32.totalorder %s121, %s122
      %p134 = scmp.eq.s32.totalorder %s28, 1
      %p135 = por %p133, %p134
      %p137 = scmp.ne.s32.totalorder %s122, %s136
      %p138 = scmp.eq.s32.totalorder %s28, 0
      %p139 = por %p137, %p138
      %s141 = sadd.s32 %s140, 1
      %p144 = scmp.eq.s32.totalorder %s22, 1
      %p145 = scmp.ne.s32.totalorder %s140, %s142
      %p146 = scmp.eq.s32.totalorder %s22, 0
      %p147 = por %p145, %p146
      %p148 = scmp.ne.s32.totalorder %s140, %s142
      %p149 = scmp.eq.s32.totalorder %s27, 1
      %p150 = por %p148, %p149
      %p151 = scmp.ne.s32.totalorder %s142, %s143
      %p152 = scmp.eq.s32.totalorder %s27, 0
      %p153 = por %p151, %p152
      %p154 = scmp.ne.s32.totalorder %s142, %s143
      %p155 = scmp.eq.s32.totalorder %s28, 1
      %p156 = por %p154, %p155
      %p158 = scmp.ne.s32.totalorder %s143, %s157
      %p159 = scmp.eq.s32.totalorder %s28, 0
      %p160 = por %p158, %p159
      %s162 = sadd.s32 %s161, 1
      %p165 = scmp.eq.s32.totalorder %s22, 1
      %p166 = scmp.ne.s32.totalorder %s161, %s163
      %p167 = scmp.eq.s32.totalorder %s22, 0
      %p168 = por %p166, %p167
      %p169 = scmp.ne.s32.totalorder %s161, %s163
      %p170 = scmp.eq.s32.totalorder %s27, 1
      %p171 = por %p169, %p170
      %p172 = scmp.ne.s32.totalorder %s163, %s164
      %p173 = scmp.eq.s32.totalorder %s27, 0
      %p174 = por %p172, %p173
      %p175 = scmp.ne.s32.totalorder %s163, %s164
      %p176 = scmp.eq.s32.totalorder %s28, 1
      %p177 = por %p175, %p176
      %p179 = scmp.ne.s32.totalorder %s164, %s178
      %p180 = scmp.eq.s32.totalorder %s28, 0
      %p181 = por %p179, %p180
      %s183 = sadd.s32 %s182, 1
      %p186 = scmp.eq.s32.totalorder %s22, 1
      %p187 = scmp.ne.s32.totalorder %s182, %s184
      %p188 = scmp.eq.s32.totalorder %s22, 0
      %p189 = por %p187, %p188
      %p190 = scmp.ne.s32.totalorder %s182, %s184
      %p191 = scmp.eq.s32.totalorder %s27, 1
      %p192 = por %p190, %p191
      %p193 = scmp.ne.s32.totalorder %s184, %s185
      %p194 = scmp.eq.s32.totalorder %s27, 0
      %p195 = por %p193, %p194
      %p196 = scmp.ne.s32.totalorder %s184, %s185
      %p197 = scmp.eq.s32.totalorder %s28, 1
      %p198 = por %p196, %p197
      %p200 = scmp.ne.s32.totalorder %s185, %s199
      %p201 = scmp.eq.s32.totalorder %s28, 0
      %p202 = por %p200, %p201
      %s204 = sadd.s32 %s203, 1
      %p207 = scmp.eq.s32.totalorder %s22, 1
      %p208 = scmp.ne.s32.totalorder %s203, %s205
      %p209 = scmp.eq.s32.totalorder %s22, 0
      %p210 = por %p208, %p209
      %p211 = scmp.ne.s32.totalorder %s203, %s205
      %p212 = scmp.eq.s32.totalorder %s27, 1
      %p213 = por %p211, %p212
      %p214 = scmp.ne.s32.totalorder %s205, %s206
      %p215 = scmp.eq.s32.totalorder %s27, 0
      %p216 = por %p214, %p215
      %p217 = scmp.ne.s32.totalorder %s205, %s206
      %p218 = scmp.eq.s32.totalorder %s28, 1
      %p219 = por %p217, %p218
      %p221 = scmp.ne.s32.totalorder %s206, %s220
      %p222 = scmp.eq.s32.totalorder %s28, 0
      %p223 = por %p221, %p222
      %s225 = sadd.s32 %s224, 1
      %p228 = scmp.eq.s32.totalorder %s22, 1
      %p229 = scmp.ne.s32.totalorder %s224, %s226
      %p230 = scmp.eq.s32.totalorder %s22, 0
      %p231 = por %p229, %p230
      %p232 = scmp.ne.s32.totalorder %s224, %s226
      %p233 = scmp.eq.s32.totalorder %s27, 1
      %p234 = por %p232, %p233
      %p235 = scmp.ne.s32.totalorder %s226, %s227
      %p236 = scmp.eq.s32.totalorder %s27, 0
      %p237 = por %p235, %p236
      %p238 = scmp.ne.s32.totalorder %s226, %s227
      %p239 = scmp.eq.s32.totalorder %s28, 1
      %p240 = por %p238, %p239
      %p242 = scmp.ne.s32.totalorder %s227, %s241
      %p243 = scmp.eq.s32.totalorder %s28, 0
      %p244 = por %p242, %p243
      %s246 = sadd.s32 %s245, 1
      %p249 = scmp.eq.s32.totalorder %s22, 1
      %p250 = scmp.ne.s32.totalorder %s245, %s247
      %p251 = scmp.eq.s32.totalorder %s22, 0
      %p252 = por %p250, %p251
      %p253 = scmp.ne.s32.totalorder %s245, %s247
      %p254 = scmp.eq.s32.totalorder %s27, 1
      %p255 = por %p253, %p254
      %p256 = scmp.ne.s32.totalorder %s247, %s248
      %p257 = scmp.eq.s32.totalorder %s27, 0
      %p258 = por %p256, %p257
      %p259 = scmp.ne.s32.totalorder %s247, %s248
      %p260 = scmp.eq.s32.totalorder %s28, 1
      %p261 = por %p259, %p260
      %p263 = scmp.ne.s32.totalorder %s248, %s262
      %p264 = scmp.eq.s32.totalorder %s28, 0
      %p265 = por %p263, %p264
      %s267 = sadd.s32 %s266, 1
      %p270 = scmp.eq.s32.totalorder %s22, 1
      %p271 = scmp.ne.s32.totalorder %s266, %s268
      %p272 = scmp.eq.s32.totalorder %s22, 0
      %p273 = por %p271, %p272
      %p274 = scmp.ne.s32.totalorder %s266, %s268
      %p275 = scmp.eq.s32.totalorder %s27, 1
      %p276 = por %p274, %p275
      %p277 = scmp.ne.s32.totalorder %s268, %s269
      %p278 = scmp.eq.s32.totalorder %s27, 0
      %p279 = por %p277, %p278
      %p280 = scmp.ne.s32.totalorder %s268, %s269
      %p281 = scmp.eq.s32.totalorder %s28, 1
      %p282 = por %p280, %p281
      %p284 = scmp.ne.s32.totalorder %s269, %s283
      %p285 = scmp.eq.s32.totalorder %s28, 0
      %p286 = por %p284, %p285
      %s288 = sadd.s32 %s287, 1
      %p291 = scmp.eq.s32.totalorder %s22, 1
      %p292 = scmp.ne.s32.totalorder %s287, %s289
      %p293 = scmp.eq.s32.totalorder %s22, 0
      %p294 = por %p292, %p293
      %p295 = scmp.ne.s32.totalorder %s287, %s289
      %p296 = scmp.eq.s32.totalorder %s27, 1
      %p297 = por %p295, %p296
      %p298 = scmp.ne.s32.totalorder %s289, %s290
      %p299 = scmp.eq.s32.totalorder %s27, 0
      %p300 = por %p298, %p299
      %p301 = scmp.ne.s32.totalorder %s289, %s290
      %p302 = scmp.eq.s32.totalorder %s28, 1
      %p303 = por %p301, %p302
      %p305 = scmp.ne.s32.totalorder %s290, %s304
      %p306 = scmp.eq.s32.totalorder %s28, 0
      %p307 = por %p305, %p306
      %s308 = ssub.s32 %s22, %s29
      %p309 = scmp.eq.s32.totalorder %s308, 0
      %s311 = sadd.s32 %s310, 1
      %s312 = scalar_select %p309, %s310, %s311
      %p315 = pneg %p309
      %p316 = scmp.eq.s32.totalorder %s22, 1
      %p317 = por %p315, %p316
      %p318 = scmp.ne.s32.totalorder %s310, %s313
      %p319 = scmp.eq.s32.totalorder %s22, 0
      %p320 = por %p318, %p319
      %p321 = scmp.ne.s32.totalorder %s310, %s313
      %p322 = scmp.eq.s32.totalorder %s27, 1
      %p323 = por %p321, %p322
      %p324 = scmp.ne.s32.totalorder %s313, %s314
      %p325 = scmp.eq.s32.totalorder %s27, 0
      %p326 = por %p324, %p325
      %p327 = scmp.ne.s32.totalorder %s313, %s314
      %p328 = scmp.eq.s32.totalorder %s28, 1
      %p329 = por %p327, %p328
      %p331 = scmp.ne.s32.totalorder %s314, %s330
      %p332 = scmp.eq.s32.totalorder %s28, 0
      %p333 = por %p331, %p332
      %p334 = scmp.le.s32.totalorder 1, %s22
      %p335 = scmp.lt.s32.totalorder %s22, 3
      %p336 = pnand %p334, %p335
      %p337 = pneg %p336
      // Predicated region
      $region9: #{tpu_custom_call.1} parent=5 // pred_check
        _
      $region10: #{tpu_custom_call.1} parent=5 // pred_check_branch
        %339 = sbr.rel (%p336) target = $region12
      $region11: #{tpu_custom_call.1} parent=5 // pred_region
        %s340 = ssub.s32 %s22, 1
        // Predicated region
        $region13: #{tpu_custom_call.1} parent=11 // pred_check
          %p341 = pneg %p69
        $region14: #{tpu_custom_call.1} parent=11 // pred_check_branch
          %343 = sbr.rel (%p341) target = $region16
        $region15: #{tpu_custom_call.1} parent=11 // pred_region
          _
        $region16: #{tpu_custom_call.1} parent=11 // pred_fallthru
          _
        // Predicated region
        $region17: #{tpu_custom_call.1} parent=11 // pred_check
          %p344 = pneg %p90
        $region18: #{tpu_custom_call.1} parent=11 // pred_check_branch
          %346 = sbr.rel (%p344) target = $region20
        $region19: #{tpu_custom_call.1} parent=11 // pred_region
          _
        $region20: #{tpu_custom_call.1} parent=11 // pred_fallthru
          _
        // Predicated region
        $region21: #{tpu_custom_call.1} parent=11 // pred_check
          %p347 = pneg %p111
        $region22: #{tpu_custom_call.1} parent=11 // pred_check_branch
          %349 = sbr.rel (%p347) target = $region24
        $region23: #{tpu_custom_call.1} parent=11 // pred_region
          _
        $region24: #{tpu_custom_call.1} parent=11 // pred_fallthru
          _
        // Predicated region
        $region25: #{tpu_custom_call.1} parent=11 // pred_check
          %p350 = pneg %p132
        $region26: #{tpu_custom_call.1} parent=11 // pred_check_branch
          %352 = sbr.rel (%p350) target = $region28
        $region27: #{tpu_custom_call.1} parent=11 // pred_region
          _
        $region28: #{tpu_custom_call.1} parent=11 // pred_fallthru
          _
        // Predicated region
        $region29: #{tpu_custom_call.1} parent=11 // pred_check
          %p353 = pneg %p153
        $region30: #{tpu_custom_call.1} parent=11 // pred_check_branch
          %355 = sbr.rel (%p353) target = $region32
        $region31: #{tpu_custom_call.1} parent=11 // pred_region
          _
        $region32: #{tpu_custom_call.1} parent=11 // pred_fallthru
          _
        // Predicated region
        $region33: #{tpu_custom_call.1} parent=11 // pred_check
          %p356 = pneg %p174
        $region34: #{tpu_custom_call.1} parent=11 // pred_check_branch
          %358 = sbr.rel (%p356) target = $region36
        $region35: #{tpu_custom_call.1} parent=11 // pred_region
          _
        $region36: #{tpu_custom_call.1} parent=11 // pred_fallthru
          _
        // Predicated region
        $region37: #{tpu_custom_call.1} parent=11 // pred_check
          %p359 = pneg %p195
        $region38: #{tpu_custom_call.1} parent=11 // pred_check_branch
          %361 = sbr.rel (%p359) target = $region40
        $region39: #{tpu_custom_call.1} parent=11 // pred_region
          _
        $region40: #{tpu_custom_call.1} parent=11 // pred_fallthru
          _
        // Predicated region
        $region41: #{tpu_custom_call.1} parent=11 // pred_check
          %p362 = pneg %p216
        $region42: #{tpu_custom_call.1} parent=11 // pred_check_branch
          %364 = sbr.rel (%p362) target = $region44
        $region43: #{tpu_custom_call.1} parent=11 // pred_region
          _
        $region44: #{tpu_custom_call.1} parent=11 // pred_fallthru
          _
        // Predicated region
        $region45: #{tpu_custom_call.1} parent=11 // pred_check
          %p365 = pneg %p237
        $region46: #{tpu_custom_call.1} parent=11 // pred_check_branch
          %367 = sbr.rel (%p365) target = $region48
        $region47: #{tpu_custom_call.1} parent=11 // pred_region
          _
        $region48: #{tpu_custom_call.1} parent=11 // pred_fallthru
          _
        // Predicated region
        $region49: #{tpu_custom_call.1} parent=11 // pred_check
          %p368 = pneg %p258
        $region50: #{tpu_custom_call.1} parent=11 // pred_check_branch
          %370 = sbr.rel (%p368) target = $region52
        $region51: #{tpu_custom_call.1} parent=11 // pred_region
          _
        $region52: #{tpu_custom_call.1} parent=11 // pred_fallthru
          _
        // Predicated region
        $region53: #{tpu_custom_call.1} parent=11 // pred_check
          %p371 = pneg %p279
        $region54: #{tpu_custom_call.1} parent=11 // pred_check_branch
          %373 = sbr.rel (%p371) target = $region56
        $region55: #{tpu_custom_call.1} parent=11 // pred_region
          _
        $region56: #{tpu_custom_call.1} parent=11 // pred_fallthru
          _
        // Predicated region
        $region57: #{tpu_custom_call.1} parent=11 // pred_check
          %p374 = pneg %p300
        $region58: #{tpu_custom_call.1} parent=11 // pred_check_branch
          %376 = sbr.rel (%p374) target = $region60
        $region59: #{tpu_custom_call.1} parent=11 // pred_region
          _
        $region60: #{tpu_custom_call.1} parent=11 // pred_fallthru
          _
      $region12: #{tpu_custom_call.1} parent=5 // pred_fallthru
        _
      %p377 = scmp.lt.s32.totalorder %s22, 2
      // Predicated region
      $region61: #{tpu_custom_call.1} parent=5 // pred_check
        %p378 = pneg %p377
      $region62: #{tpu_custom_call.1} parent=5 // pred_check_branch
        %380 = sbr.rel (%p378) target = $region64
      $region63: #{tpu_custom_call.1} parent=5 // pred_region
        // Predicated region
        $region65: #{tpu_custom_call.1} parent=63 // pred_check
          %p381 = pneg %p42
        $region66: #{tpu_custom_call.1} parent=63 // pred_check_branch
          %383 = sbr.rel (%p381) target = $region68
        $region67: #{tpu_custom_call.1} parent=63 // pred_region
          %p384 = scmp.lt.s32.totalorder %s22, 1
          %s385 = scalar_select %p384, %s22, 1
          %s386 = smul.addr %s385, 8
          %s387 = scalar_lea.vmem %s0, %s386
        $region68: #{tpu_custom_call.1} parent=63 // pred_fallthru
          _
      $region64: #{tpu_custom_call.1} parent=5 // pred_fallthru
        _
      %p388 = scmp.le.s32.totalorder 1, %s22
      %p389 = scmp.lt.s32.totalorder %s22, 3
      %p390 = pnand %p388, %p389
      %p391 = pneg %p390
      // Predicated region
      $region69: #{tpu_custom_call.1} parent=5 // pred_check
        _
      $region70: #{tpu_custom_call.1} parent=5 // pred_check_branch
        %393 = sbr.rel (%p390) target = $region72
      $region71: #{tpu_custom_call.1} parent=5 // pred_region
        %s394 = ssub.s32 %s22, 1
        %p395 = scmp.lt.s32.totalorder %s27, 1
        %s396 = scalar_select %p395, %s27, 1
        %s397 = smul.addr %s396, 8
        %s398 = scalar_lea.vmem %s0, %s397
        %p399 = pneg %p48
        %p400 = pneg %p45
        %p401 = pneg %p69
        %p402 = pneg %p66
        %p403 = pneg %p90
        %p404 = pneg %p87
        %p405 = pneg %p111
        %p406 = pneg %p108
        %p407 = pneg %p132
        %p408 = pneg %p129
        %p409 = pneg %p153
        %p410 = pneg %p150
        %p411 = pneg %p174
        %p412 = pneg %p171
        %p413 = pneg %p195
        %p414 = pneg %p192
        %p415 = pneg %p216
        %p416 = pneg %p213
        %p417 = pneg %p237
        %p418 = pneg %p234
        %p419 = pneg %p258
        %p420 = pneg %p255
        %p421 = pneg %p279
        %p422 = pneg %p276
        %p423 = pneg %p300
        %p424 = pneg %p297
        %p425 = pneg %p326
        %p426 = pneg %p323
        %s427 = sand.u32 %s313, 1
        %s428 = scalar_lea.sflag [#allocation3], %s427
        %s429 = sand.u32 %s313, 1
        %s430 = smul.addr %s429, 8
        %s431 = scalar_lea.vmem [#allocation2], %s430
        %p432 = scmp.lt.s32.totalorder %s27, 1
        %s433 = scalar_select %p432, %s27, 1
        %s434 = smul.addr %s433, 8
        %s435 = scalar_lea.vmem %s0, %s434
        %v437 = vld [vmem:[%s1] sm:$0x1]
        %v438 = vld [vmem:[%s2] sm:$0x1]
        %v439 = vld [vmem:[%s7] sm:$0x1]
        %v440 = vld [vmem:[%s8] sm:$0x1]
        %v441 = vld [vmem:[%s3] sm:$0xf]
        %v442 = vld [vmem:[%s3 + $0x4] sm:$0xf]
        %v443 = vld [vmem:[%s5] sm:$0xf]
        %v444 = vld [vmem:[%s9] sm:$0xf]
        %v445 = vld [vmem:[%s9 + $0x4] sm:$0xf]
        %v446 = vld [vmem:[%s9 + $0x8] sm:$0xf]
        %v447 = vld [vmem:[%s9 + $0xc] sm:$0xf]
        %v448 = vld [vmem:[%s11] sm:$0xf]
        %v449 = vld [vmem:[%s11 + $0x4] sm:$0xf]
        %v450 = vld [vmem:[%s11 + $0x8] sm:$0xf]
        %v451 = vld [vmem:[%s11 + $0xc] sm:$0xf]
        %v452 = vld [vmem:[%s11 + $0x10] sm:$0xf]
        %v453 = vld [vmem:[%s11 + $0x14] sm:$0xf]
        %v454 = vld [vmem:[%s11 + $0x18] sm:$0xf]
        %v455 = vld [vmem:[%s11 + $0x1c] sm:$0xf]
        %v456 = vld [vmem:[%s4] sm:$0xff]
        %v457 = vld [vmem:[%s4 + $0x8] sm:$0xff]
        %v458 = vld [vmem:[%s6] sm:$0xff]
        %v459 = vld [vmem:[%s10] sm:$0x1]
        %v460 = vld [vmem:[%s12] sm:$0x1]
        %v461 = vld [vmem:[%s435] sm:$0xff]
        %vm462 = vcmask 261120
        %v463 = vsel %vm462, %v461, 0.0
        %464 = vadd.xlane.f32.xlu0 %v463
        %v465 = vpop.xlane.xlu0 %464
        %v466 = vrcp.pop 32.0
        %v467 = vmul.f32 32.0, %v466
        %v468 = vsub.f32 1.0, %v467
        %v469 = vmul.f32 %v466, %v468
        %v470 = vadd.f32 %v466, %v469
        %vm471 = vweird.f32 %v466
        %v472 = vsel %vm471, %v466, %v470
        %v473 = vmul.f32 %v465, %v472
        %v474 = vsub.f32 %v461, %v473
        %v475 = vmul.f32 %v474, %v474
        %v476 = vsel %vm462, %v475, 0.0
        %477 = vadd.xlane.f32.xlu0 %v476
        %v478 = vpop.xlane.xlu0 %477
        %v479 = vmul.f32 %v478, %v472
        %v480 = vadd.f32 %v479, 1e-05
        %v481 = vrsqrt.pop %v480
        %v482 = vmul.f32 %v481, %v480
        %v483 = vmul.f32 %v482, %v481
        %v484 = vmul.f32 0.5, %v483
        %v485 = vsub.f32 1.5, %v484
        %v486 = vmul.f32 %v481, %v485
        %vm487 = vweird.f32 %v480
        %vm488 = vweird.f32 %v481
        %vm489 = vmor %vm487, %vm488
        %v490 = vsel %vm489, %v481, %v486
        %v491 = vmul.f32 %v474, %v490
        %v493 = vperm.slane %v437, 0
        %v495 = vmul.f32 %v491, %v493
        %v497 = vperm.slane %v438, 0
        %v499 = vadd.f32 %v495, %v497
        %v500 = vpack.c.bf16 %v499, %v499
        %502 = vset.pattern.permute.xlu0 0
        %503 = vperm.xlu0 %502, %v456
        %v504 = vpop.permute.xlu0 %503
        %507 = vset.pattern.permute.xlu0 0
        %508 = vperm.xlu0 %507, %v457
        %v509 = vpop.permute.xlu0 %508
        %v513 = vunpack.c.l.b16 %v441
        %v514 = vunpack.c.l.b16 %v442
        %v515 = vpack.c.b16 %v514, %v513
        %vm516 = vcmask 64512
        %v518 = vsel %vm516, %v515, 0
        %vm520 = vcmask 1043456
        %v522 = vsel %vm520, %v500, 0
        %524 = vmatpush.bf16.msra.mxu0 0
        %525 = vmatpush.bf16.msra.mxu0 0
        %526 = vmatpush.bf16.msra.mxu0 0
        %527 = vmatpush.bf16.msra.mxu0 0
        %528 = vmatpush.bf16.msra.mxu0 0
        %529 = vmatpush.bf16.msra.mxu0 0
        %530 = vmatpush.bf16.msra.mxu0 0
        %531 = vmatpush.bf16.msra.mxu0 %v522
        %532 = vmatmul.bf16.gmra.mxu0 %v518
        %v533 = vpop.f32.mrf.mxu0
        %v534 = vadd.f32 %v504, %v533
        %v535 = vpop.f32.mrf.mxu0
        %v536 = vadd.f32 %v509, %v535
        %537 = vdwg.mxu0
        %v538 = vmul.f32 %v534, 0.5
        %v539 = vmul.f32 %v536, 0.5
        %v540 = vmul.f32 %v534, 0.70710677
        %v541 = vmul.f32 %v536, 0.70710677
        %v542 = vmul.f32 %v540, %v540
        %v543 = vmin.f32 16.0, %v542
        %v544 = vmul.f32 %v543, 2.1237322e-06
        %v545 = vadd.f32 %v544, 0.00028619796
        %v546 = vmul.f32 %v543, %v545
        %v547 = vadd.f32 %v546, 0.0036580483
        %v548 = vmul.f32 %v543, %v547
        %v549 = vadd.f32 %v548, 0.05243302
        %v550 = vmul.f32 %v543, %v549
        %v551 = vadd.f32 %v550, 0.18741608
        %v552 = vmul.f32 %v543, %v551
        %v553 = vadd.f32 %v552, 1.1283791
        %v554 = vmul.f32 %v540, %v553
        %v555 = vmul.f32 %v543, 3.8918573e-05
        %v556 = vadd.f32 %v555, 0.001143296
        %v557 = vmul.f32 %v543, %v556
        %v558 = vadd.f32 %v557, 0.014752088
        %v559 = vmul.f32 %v543, %v558
        %v560 = vadd.f32 %v559, 0.112945676
        %v561 = vmul.f32 %v543, %v560
        %v562 = vadd.f32 %v561, 0.4994258
        %v563 = vmul.f32 %v543, %v562
        %v564 = vadd.f32 %v563, 1.0
        %v565 = vrcp.pop %v564
        %v566 = vmul.f32 %v564, %v565
        %v567 = vsub.f32 1.0, %v566
        %v568 = vmul.f32 %v565, %v567
        %v569 = vadd.f32 %v565, %v568
        %vm570 = vweird.f32 %v564
        %vm571 = vweird.f32 %v565
        %vm572 = vmor %vm570, %vm571
        %v573 = vsel %vm572, %v565, %v569
        %v574 = vand.u32 2147483647, %v564
        %vm575 = vcmp.eq.f32.partialorder %v574, 8.507059e+37
        %v576 = vand.u32 %v564, 2147483648
        %v577 = vor.u32 1.1754944e-38, %v576
        %v578 = vsel %vm575, %v577, %v573
        %v579 = vmul.f32 %v554, %v578
        %v580 = vmin.f32 %v579, 1.0
        %v581 = vmax.f32 %v580, -1.0
        %v582 = vmul.f32 %v541, %v541
        %v583 = vmin.f32 16.0, %v582
        %v584 = vmul.f32 %v583, 2.1237322e-06
        %v585 = vadd.f32 %v584, 0.00028619796
        %v586 = vmul.f32 %v583, %v585
        %v587 = vadd.f32 %v586, 0.0036580483
        %v588 = vmul.f32 %v583, %v587
        %v589 = vadd.f32 %v588, 0.05243302
        %v590 = vmul.f32 %v583, %v589
        %v591 = vadd.f32 %v590, 0.18741608
        %v592 = vmul.f32 %v583, %v591
        %v593 = vadd.f32 %v592, 1.1283791
        %v594 = vmul.f32 %v541, %v593
        %v595 = vmul.f32 %v583, 3.8918573e-05
        %v596 = vadd.f32 %v595, 0.001143296
        %v597 = vmul.f32 %v583, %v596
        %v598 = vadd.f32 %v597, 0.014752088
        %v599 = vmul.f32 %v583, %v598
        %v600 = vadd.f32 %v599, 0.112945676
        %v601 = vmul.f32 %v583, %v600
        %v602 = vadd.f32 %v601, 0.4994258
        %v603 = vmul.f32 %v583, %v602
        %v604 = vadd.f32 %v603, 1.0
        %v605 = vrcp.pop %v604
        %v606 = vmul.f32 %v604, %v605
        %v607 = vsub.f32 1.0, %v606
        %v608 = vmul.f32 %v605, %v607
        %v609 = vadd.f32 %v605, %v608
        %vm610 = vweird.f32 %v604
        %vm611 = vweird.f32 %v605
        %vm612 = vmor %vm610, %vm611
        %v613 = vsel %vm612, %v605, %v609
        %v614 = vand.u32 2147483647, %v604
        %vm615 = vcmp.eq.f32.partialorder %v614, 8.507059e+37
        %v616 = vand.u32 %v604, 2147483648
        %v617 = vor.u32 1.1754944e-38, %v616
        %v618 = vsel %vm615, %v617, %v613
        %v619 = vmul.f32 %v594, %v618
        %v620 = vmin.f32 %v619, 1.0
        %v621 = vmax.f32 %v620, -1.0
        %v622 = vadd.f32 %v581, 1.0
        %v623 = vadd.f32 %v621, 1.0
        %v624 = vmul.f32 %v538, %v622
        %v625 = vmul.f32 %v539, %v623
        %v626 = vpack.c.bf16 %v625, %v624
        %vm627 = vcmask 130048
        %v629 = vsel %vm627, %v443, 0
        %631 = vmatpush.bf16.msra.mxu0 0
        %632 = vmatpush.bf16.msra.mxu0 0
        %633 = vmatpush.bf16.msra.mxu0 0
        %634 = vmatpush.bf16.msra.mxu0 0
        %635 = vmatpush.bf16.msra.mxu0 0
        %636 = vmatpush.bf16.msra.mxu0 0
        %637 = vmatpush.bf16.msra.mxu0 0
        %638 = vmatpush.bf16.msra.mxu0 %v626
        %639 = vmatmul.bf16.gmra.mxu0 %v629
        %v640 = vpop.f32.mrf.mxu0
        %v641 = vadd.f32 0.0, %v640
        %v642 = vpop.f32.mrf.mxu0
        %643 = vdwg.mxu0
        %v644 = vadd.f32 %v461, %v641
        %646 = vset.pattern.permute.xlu0 0
        %647 = vperm.xlu0 %646, %v458
        %v648 = vpop.permute.xlu0 %647
        %v650 = vadd.f32 %v644, %v648
        %v651 = vsel %vm462, %v650, 0.0
        %652 = vadd.xlane.f32.xlu0 %v651
        %v653 = vpop.xlane.xlu0 %652
        %v654 = vmul.f32 %v653, %v472
        %v655 = vsub.f32 %v650, %v654
        %v656 = vmul.f32 %v655, %v655
        %v657 = vsel %vm462, %v656, 0.0
        %658 = vadd.xlane.f32.xlu0 %v657
        %v659 = vpop.xlane.xlu0 %658
        %v660 = vmul.f32 %v659, %v472
        %v661 = vadd.f32 %v660, 1e-05
        %v662 = vrsqrt.pop %v661
        %v663 = vmul.f32 %v662, %v661
        %v664 = vmul.f32 %v663, %v662
        %v665 = vmul.f32 0.5, %v664
        %v666 = vsub.f32 1.5, %v665
        %v667 = vmul.f32 %v662, %v666
        %vm668 = vweird.f32 %v661
        %vm669 = vweird.f32 %v662
        %vm670 = vmor %vm668, %vm669
        %v671 = vsel %vm670, %v662, %v667
        %v672 = vmul.f32 %v655, %v671
        %v674 = vperm.slane %v439, 0
        %v676 = vmul.f32 %v672, %v674
        %v678 = vperm.slane %v440, 0
        %v680 = vadd.f32 %v676, %v678
        %v681 = vpack.c.bf16 %v680, %v680
        %v683 = vperm.slane %v459, 0
        %v689 = vunpack.c.l.b16 %v444
        %v690 = vunpack.c.l.b16 %v445
        %v691 = vunpack.c.l.b16 %v446
        %v692 = vunpack.c.l.b16 %v447
        %v693 = vpack.c.b16 %v690, %v689
        %v694 = vpack.c.b16 %v692, %v691
        %v698 = vsel %vm462, %v681, 0
        %700 = vmatpush.bf16.msra.mxu0 0
        %701 = vmatpush.bf16.msra.mxu0 0
        %702 = vmatpush.bf16.msra.mxu0 0
        %703 = vmatpush.bf16.msra.mxu0 0
        %704 = vmatpush.bf16.msra.mxu0 0
        %705 = vmatpush.bf16.msra.mxu0 0
        %706 = vmatpush.bf16.msra.mxu0 %v694
        %707 = vmatpush.bf16.msra.mxu0 %v693
        %708 = vmatmul.bf16.gmra.mxu0 %v698
        %v709 = vpop.f32.mrf.mxu0
        %v710 = vadd.f32 %v683, %v709
        %v711 = vpop.f32.mrf.mxu0
        %712 = vdwg.mxu0
        %v713 = vmul.f32 %v710, 0.5
        %v714 = vmul.f32 %v710, 0.70710677
        %v715 = vmul.f32 %v714, %v714
        %v716 = vmin.f32 16.0, %v715
        %v717 = vmul.f32 %v716, 2.1237322e-06
        %v718 = vadd.f32 %v717, 0.00028619796
        %v719 = vmul.f32 %v716, %v718
        %v720 = vadd.f32 %v719, 0.0036580483
        %v721 = vmul.f32 %v716, %v720
        %v722 = vadd.f32 %v721, 0.05243302
        %v723 = vmul.f32 %v716, %v722
        %v724 = vadd.f32 %v723, 0.18741608
        %v725 = vmul.f32 %v716, %v724
        %v726 = vadd.f32 %v725, 1.1283791
        %v727 = vmul.f32 %v714, %v726
        %v728 = vmul.f32 %v716, 3.8918573e-05
        %v729 = vadd.f32 %v728, 0.001143296
        %v730 = vmul.f32 %v716, %v729
        %v731 = vadd.f32 %v730, 0.014752088
        %v732 = vmul.f32 %v716, %v731
        %v733 = vadd.f32 %v732, 0.112945676
        %v734 = vmul.f32 %v716, %v733
        %v735 = vadd.f32 %v734, 0.4994258
        %v736 = vmul.f32 %v716, %v735
        %v737 = vadd.f32 %v736, 1.0
        %v738 = vrcp.pop %v737
        %v739 = vmul.f32 %v737, %v738
        %v740 = vsub.f32 1.0, %v739
        %v741 = vmul.f32 %v738, %v740
        %v742 = vadd.f32 %v738, %v741
        %vm743 = vweird.f32 %v737
        %vm744 = vweird.f32 %v738
        %vm745 = vmor %vm743, %vm744
        %v746 = vsel %vm745, %v738, %v742
        %v747 = vand.u32 2147483647, %v737
        %vm748 = vcmp.eq.f32.partialorder %v747, 8.507059e+37
        %v749 = vand.u32 %v737, 2147483648
        %v750 = vor.u32 1.1754944e-38, %v749
        %v751 = vsel %vm748, %v750, %v746
        %v752 = vmul.f32 %v727, %v751
        %v753 = vmin.f32 %v752, 1.0
        %v754 = vmax.f32 %v753, -1.0
        %v755 = vadd.f32 %v754, 1.0
        %v756 = vmul.f32 %v713, %v755
        %v757 = vpack.c.bf16 %v756, %v756
        %v766 = vunpack.c.l.b16 %v448
        %v767 = vunpack.c.l.b16 %v449
        %v768 = vunpack.c.l.b16 %v450
        %v769 = vunpack.c.l.b16 %v451
        %v770 = vunpack.c.l.b16 %v452
        %v771 = vunpack.c.l.b16 %v453
        %v772 = vunpack.c.l.b16 %v454
        %v773 = vunpack.c.l.b16 %v455
        %v774 = vpack.c.b16 %v767, %v766
        %v775 = vpack.c.b16 %v769, %v768
        %v776 = vpack.c.b16 %v771, %v770
        %v777 = vpack.c.b16 %v773, %v772
        %vm782 = vcmask 523264
        %v784 = vsel %vm782, %v757, 0
        %786 = vmatpush.bf16.msra.mxu0 0
        %787 = vmatpush.bf16.msra.mxu0 0
        %788 = vmatpush.bf16.msra.mxu0 0
        %789 = vmatpush.bf16.msra.mxu0 0
        %790 = vmatpush.bf16.msra.mxu0 %v777
        %791 = vmatpush.bf16.msra.mxu0 %v776
        %792 = vmatpush.bf16.msra.mxu0 %v775
        %793 = vmatpush.bf16.msra.mxu0 %v774
        %794 = vmatmul.bf16.gmra.mxu0 %v784
        %v795 = vpop.f32.mrf.mxu0
        %v796 = vadd.f32 0.0, %v795
        %v797 = vpop.f32.mrf.mxu0
        %798 = vdwg.mxu0
        %v799 = vadd.f32 %v650, %v796
        %v801 = vperm.slane %v460, 0
        %v803 = vadd.f32 %v799, %v801
        %804 = vst.msk [vmem:[%s431] sm:$0xff] %vm462, %v803
        %s805 = sand.u32 %s313, 1
        %s806 = scalar_lea.sflag [#allocation3], %s805
        %s807 = sand.u32 %s313, 1
        %s808 = smul.addr %s807, 8
        %s809 = scalar_lea.vmem [#allocation2], %s808
        // Predicated region
        $region73: #{tpu_custom_call.1} parent=71 // pred_check
          %p810 = pneg %p323
        $region74: #{tpu_custom_call.1} parent=71 // pred_check_branch
          %812 = sbr.rel (%p810) target = $region76
        $region75: #{tpu_custom_call.1} parent=71 // pred_region
          %814 = vsyncadd %s806, 0
          %s815 = smul.addr %s27, 8
          %s816 = scalar_lea.hbm %s13, %s815
          %s818 = sshll.u32 %s809, 4
          %s819 = int_to_ptr.vmem [resolvable:$true] %s818
          %s820 = sshll.u32 %s816, 4
          %s821 = int_to_ptr.hbm [resolvable:$true] %s820
          %823 = dma.vmem_to_hbm [thread:$0]  %s819, 128, %s821, %s806
        $region76: #{tpu_custom_call.1} parent=71 // pred_fallthru
          _
      $region72: #{tpu_custom_call.1} parent=5 // pred_fallthru
        _
      %p824 = scmp.le.s32.totalorder 2, %s22
      // Predicated region
      $region77: #{tpu_custom_call.1} parent=5 // pred_check
        %p825 = pneg %p824
      $region78: #{tpu_custom_call.1} parent=5 // pred_check_branch
        %827 = sbr.rel (%p825) target = $region80
      $region79: #{tpu_custom_call.1} parent=5 // pred_region
        %s828 = ssub.s32 %s22, 2
        // Predicated region
        $region81: #{tpu_custom_call.1} parent=79 // pred_check
          %p829 = pneg %p329
        $region82: #{tpu_custom_call.1} parent=79 // pred_check_branch
          %831 = sbr.rel (%p829) target = $region84
        $region83: #{tpu_custom_call.1} parent=79 // pred_region
          %s832 = sand.u32 %s314, 1
          %s833 = scalar_lea.sflag [#allocation3], %s832
          %s834 = sand.u32 %s314, 1
          %s835 = smul.addr %s834, 8
          %s836 = scalar_lea.vmem [#allocation2], %s835
          %838 = dma.done %s833, 128
        $region84: #{tpu_custom_call.1} parent=79 // pred_fallthru
          _
      $region80: #{tpu_custom_call.1} parent=5 // pred_fallthru
        _
    $region6: #{tpu_custom_call.1} parent=1 // loop_footer
      %s26 = sadd.s32 1, %s22
    $region7: #{tpu_custom_call.1} parent=1 // loop_footer_branch
      %21 = sbr.rel target = $region3
    $region8: #{tpu_custom_call.1} parent=1 // loop_exit
      _
    %839 = vsyncpa [#allocation3], 1
    %s840 = scalar_lea.sflag [#allocation3], 1
    %841 = vsyncpa %s840, 1

</llo_original>
